<compile_context>
chip_gen: v5e
topology: v5e:2x2
jax: 0.10.0
libtpu: 0.0.40
codegen_flags: <defaults>
</compile_context>

<pallas_src>
import functools

import jax
import jax.numpy as jnp
from jax import lax
from jax.experimental import pallas as pl
from jax.experimental.pallas import tpu as pltpu


def _full_spec(shape):
    """Whole-array BlockSpec for the trivial grid=(1,)."""
    zeros = (0,) * len(shape)
    return pl.BlockSpec(shape, lambda i, *_: zeros)


# ------------------ fused fnet + recurrent ECC graph conv + GRU --------------
def _rnn_gconv_kernel(src_col_ref, src_row_ref, dst_row_ref,     # int32 indices (VMEM)
                      ef_ref, fw1_ref, fb1_ref, fw2_ref, fb2_ref,
                      hx_ref, invdeg_ref, wcat_ref,
                      brz_ref, bin_ref, bhn_ref,
                      out_ref,                                   # (N, C)
                      w_scr,                                     # (C, E, C) VMEM scratch
                      *, nrepeats, nc, ne, nn, gather_mode):
    f32 = jnp.float32

    # ---- filter-generating network (computed once, shared across repeats) ----
    h = jnp.dot(ef_ref[...], fw1_ref[...], preferred_element_type=f32)
    h = jnp.maximum(h + fb1_ref[...], 0.0)
    w2d = jnp.dot(h, fw2_ref[...], preferred_element_type=f32) + fb2_ref[...]   # (E, C*C)

    # Repack filters ONCE into lane-dense blocks: w_scr[ci, e, :] = W[e, ci, :].
    # The unaligned lane slices are paid here once instead of every repeat.
    for ci in range(nc):
        w_scr[ci] = w2d[:, ci * nc:(ci + 1) * nc]

    # ---- loop-invariant one-hot scatter matrix (and optional gather matrix) ----
    node_iota = lax.broadcasted_iota(jnp.int32, (nn, ne), 0)
    scat = (node_iota == jnp.broadcast_to(dst_row_ref[...], (nn, ne))).astype(f32)  # (N, E)

    if gather_mode == "take":
        src_idx = src_row_ref[0, :]                                          # (E,) int32
    else:  # "onehot" fallback: gather on the MXU
        col_iota = lax.broadcasted_iota(jnp.int32, (ne, nn), 1)
        gath = (col_iota == jnp.broadcast_to(src_col_ref[...], (ne, nn))).astype(f32)  # (E, N)

    # ---- loop-invariant hoisted values (JAX does not CSE broadcasts) ----
    w_cat = wcat_ref[...]                                         # (2C, 6C) block-diag [Wi 0; 0 Wh]
    inv_deg = jnp.broadcast_to(invdeg_ref[...], (nn, nc))         # per-node 1/deg
    b_rz = jnp.broadcast_to(brz_ref[...], (nn, 2 * nc))           # folded r/z biases
    b_in = jnp.broadcast_to(bin_ref[...], (nn, nc))
    b_hn = jnp.broadcast_to(bhn_ref[...], (nn, nc))

    def repeat_body(_, hx):
        # gather source-node rows: hx_src[e] = hx[src[e]]   (vectorized)
        if gather_mode == "take":
            hx_src = jnp.take(hx, src_idx, axis=0, mode="clip")              # (E, C)
        else:
            hx_src = jnp.dot(gath, hx, preferred_element_type=f32)           # (E, C)

        # per-edge filter: msg[e, :] = sum_ci hx_src[e, ci] * W[e, ci, :]
        # (lane-dense: w_scr[ci] is a full (E, C) tile, sliced on the leading dim)
        msg = hx_src[:, 0:1] * w_scr[0]
        for ci in range(1, nc):
            msg = msg + hx_src[:, ci:ci + 1] * w_scr[ci]

        # scatter-mean on the MXU: agg[n] = (1/deg n) * sum_{e: dst[e]==n} msg[e]
        agg = jnp.dot(scat, msg, preferred_element_type=f32) * inv_deg       # (N, C)

        # GRU cell: single fused (N, 2C) @ (2C, 6C) matmul -> [gi | gh]
        gates = jnp.dot(jnp.concatenate([agg, hx], axis=1), w_cat,
                        preferred_element_type=f32)                          # (N, 6C)
        gi = gates[:, :3 * nc]
        gh = gates[:, 3 * nc:]
        rz = jax.nn.sigmoid(gi[:, :2 * nc] + gh[:, :2 * nc] + b_rz)
        r = rz[:, :nc]
        z = rz[:, nc:]
        n = jnp.tanh(gi[:, 2 * nc:] + b_in + r * (gh[:, 2 * nc:] + b_hn))
        return (1.0 - z) * n + z * hx

    out_ref[...] = lax.fori_loop(0, nrepeats, repeat_body, hx_ref[...])


# --------------------------------- wrapper -----------------------------------
def rnn_graph_conv_module(hx, edgefeats, src, dst, params, *, nrepeats):
    N, nc = hx.shape
    E = edgefeats.shape[0]

    # Per-node reciprocal in-degree (applied AFTER aggregation, like the reference).
    deg = jnp.zeros((N,), jnp.float32).at[dst].add(1.0)
    inv_deg_n = (1.0 / jnp.maximum(deg, 1.0))[:, None].astype(jnp.float32)     # (N, 1)

    # GRU parameter prep: fuse the six (C,C) gate matmuls into ONE (2C,6C)
    # block-diagonal matmul on [agg | hx]; fold r/z biases into one vector.
    wih, whh = params["gru_wih"], params["gru_whh"]          # (3, C, C), gates r,z,n
    bih, bhh = params["gru_bih"], params["gru_bhh"]          # (3, 1, C)
    w_i = jnp.concatenate([wih[0], wih[1], wih[2]], axis=1)  # (C, 3C)
    w_h = jnp.concatenate([whh[0], whh[1], whh[2]], axis=1)  # (C, 3C)
    zeros = jnp.zeros((nc, 3 * nc), jnp.float32)
    w_cat = jnp.concatenate(
        [jnp.concatenate([w_i, zeros], axis=1),
         jnp.concatenate([zeros, w_h], axis=1)], axis=0)     # (2C, 6C)
    b_rz = jnp.concatenate([bih[0] + bhh[0], bih[1] + bhh[1]], axis=1)  # (1, 2C)
    b_in, b_hn = bih[2], bhh[2]                                         # (1, C)

    src_col = src.astype(jnp.int32)[:, None]                 # (E, 1)  (one-hot fallback)
    src_row = src.astype(jnp.int32)[None, :]                 # (1, E)  (jnp.take gather)
    dst_row = dst.astype(jnp.int32)[None, :]                 # (1, E)  (one-hot scatter)

    ins = (src_col, src_row, dst_row, edgefeats,
           params["fnet_w1"], params["fnet_b1"], params["fnet_w2"], params["fnet_b2"],
           hx, inv_deg_n, w_cat, b_rz, b_in, b_hn)

    def build(gather_mode):
        kernel = functools.partial(_rnn_gconv_kernel, nrepeats=nrepeats,
                                   nc=nc, ne=E, nn=N, gather_mode=gather_mode)
        return pl.pallas_call(
            kernel,
            out_shape=jax.ShapeDtypeStruct((N, nc), jnp.float32),
            grid=(1,),
            in_specs=[_full_spec(a.shape) for a in ins],
            out_specs=pl.BlockSpec((N, nc), lambda i, *_: (0, 0)),
            scratch_shapes=[pltpu.VMEM((nc, E, nc), jnp.float32)],   # repacked filters
            compiler_params=pltpu.CompilerParams(
                dimension_semantics=("arbitrary",),
                # Demo working set is tiny; 32 MiB is safe on v5e/v6e/v7x.
                # On v5e/v6e raise toward ~100 MiB for larger monolithic graphs;
                # on v7x (64 MiB physical) stream edge blocks instead (see TODO).
                vmem_limit_bytes=32 * 1024 * 1024),
        )

    try:
        # Preferred path: vectorized jnp.take row gather.
        out = jax.block_until_ready(build("take")(*ins))
    except Exception:
        # Mosaic on this jax/libtpu has no row-gather lowering: fall back to an
        # in-kernel one-hot gather on the MXU (still no serial per-edge loop).
        out = jax.block_until_ready(build("onehot")(*ins))
    return out  # cat_all=False -> only the final hidden state


# ---------------------- pure-JAX reference (for checking) -------------------
def reference_forward(hx, edgefeats, src, dst, params, *, nrepeats):
    N, nc = hx.shape
    h = jnp.maximum(edgefeats @ params["fnet_w1"] + params["fnet_b1"], 0.0)
    weights = (h @ params["fnet_w2"] + params["fnet_b2"]).reshape(-1, nc, nc)
    deg = jnp.zeros((N,), jnp.float32).at[dst].add(1.0)
    for _ in range(nrepeats):
        msg = jnp.einsum("ec,eco->eo", hx[src], weights)
        agg = jnp.zeros((N, nc), jnp.float32).at[dst].add(msg)
        agg = agg / jnp.maximum(deg, 1.0)[:, None]
        gi = [agg @ params["gru_wih"][g] + params["gru_bih"][g, 0] for g in range(3)]
        gh = [hx @ params["gru_whh"][g] + params["gru_bhh"][g, 0] for g in range(3)]
        r = jax.nn.sigmoid(gi[0] + gh[0])
        z = jax.nn.sigmoid(gi[1] + gh[1])
        n = jnp.tanh(gi[2] + r * gh[2])
        hx = (1.0 - z) * n + z * hx
    return hx


if __name__ == "__main__":
    N, NC, E, DE, H, NREPEATS = 16, 8, 32, 8, 16, 3

    key = jax.random.PRNGKey(0)
    ks = jax.random.split(key, 10)

    hx = jax.random.normal(ks[0], (N, NC), jnp.float32)
    edgefeats = jax.random.normal(ks[1], (E, DE), jnp.float32)
    src = jnp.arange(E, dtype=jnp.int32) % N
    dst = (jnp.arange(E, dtype=jnp.int32) * 5 + 2) % N

    s = float(1.0 / (NC ** 0.5))
    params = {
        # filter_net: Linear(DE,H) + ReLU + Linear(H, NC*NC)
        "fnet_w1": jax.random.normal(ks[2], (DE, H), jnp.float32) * 0.2,
        "fnet_b1": jax.random.normal(ks[3], (1, H), jnp.float32) * 0.1,
        "fnet_w2": jax.random.normal(ks[4], (H, NC * NC), jnp.float32) * 0.2,
        "fnet_b2": jax.random.normal(ks[5], (1, NC * NC), jnp.float32) * 0.1,
        # GRUCell params, stored pre-transposed & stacked by gate (r, z, n)
        "gru_wih": jax.random.uniform(ks[6], (3, NC, NC), jnp.float32, -s, s),
        "gru_whh": jax.random.uniform(ks[7], (3, NC, NC), jnp.float32, -s, s),
        "gru_bih": jax.random.uniform(ks[8], (3, 1, NC), jnp.float32, -s, s),
        "gru_bhh": jax.random.uniform(ks[9], (3, 1, NC), jnp.float32, -s, s),
    }

    out = rnn_graph_conv_module(hx, edgefeats, src, dst, params, nrepeats=NREPEATS)
    out = jax.block_until_ready(out)

    ref = reference_forward(hx, edgefeats, src, dst, params, nrepeats=NREPEATS)
    assert out.shape == (N, NC)
    assert jnp.allclose(out, ref, atol=1e-4, rtol=1e-4), float(jnp.max(jnp.abs(out - ref)))

    print("KERNEL_OK")
</pallas_src>

<mosaic_0001>
module attributes {stable_mosaic.version = 11 : i64} {
  func.func @_rnn_gconv_kernel(%arg0: i32, %arg1: memref<32x1xi32, #tpu.memory_space<vmem>>, %arg2: memref<1x32xi32, #tpu.memory_space<vmem>>, %arg3: memref<1x32xi32, #tpu.memory_space<vmem>>, %arg4: memref<32x8xf32, #tpu.memory_space<vmem>>, %arg5: memref<8x16xf32, #tpu.memory_space<vmem>>, %arg6: memref<1x16xf32, #tpu.memory_space<vmem>>, %arg7: memref<16x64xf32, #tpu.memory_space<vmem>>, %arg8: memref<1x64xf32, #tpu.memory_space<vmem>>, %arg9: memref<16x8xf32, #tpu.memory_space<vmem>>, %arg10: memref<16x1xf32, #tpu.memory_space<vmem>>, %arg11: memref<16x48xf32, #tpu.memory_space<vmem>>, %arg12: memref<1x16xf32, #tpu.memory_space<vmem>>, %arg13: memref<1x8xf32, #tpu.memory_space<vmem>>, %arg14: memref<1x8xf32, #tpu.memory_space<vmem>>, %arg15: memref<16x8xf32, #tpu.memory_space<vmem>>, %arg16: memref<8x32x8xf32, #tpu.memory_space<vmem>>) attributes {dimension_semantics = [#tpu.dimension_semantics<arbitrary>], iteration_bounds = array<i64: 1>, scalar_prefetch = 0 : i64, scratch_operands = 1 : i64, tpu.core_type = #tpu.core_type<tc>, window_params = [{pipeline_mode = #tpu.pipeline_mode<synchronous>, transform_indices = @transform_0, window_bounds = array<i64: 32, 1>}, {pipeline_mode = #tpu.pipeline_mode<synchronous>, transform_indices = @transform_1, window_bounds = array<i64: 1, 32>}, {pipeline_mode = #tpu.pipeline_mode<synchronous>, transform_indices = @transform_2, window_bounds = array<i64: 1, 32>}, {pipeline_mode = #tpu.pipeline_mode<synchronous>, transform_indices = @transform_3, window_bounds = array<i64: 32, 8>}, {pipeline_mode = #tpu.pipeline_mode<synchronous>, transform_indices = @transform_4, window_bounds = array<i64: 8, 16>}, {pipeline_mode = #tpu.pipeline_mode<synchronous>, transform_indices = @transform_5, window_bounds = array<i64: 1, 16>}, {pipeline_mode = #tpu.pipeline_mode<synchronous>, transform_indices = @transform_6, window_bounds = array<i64: 16, 64>}, {pipeline_mode = #tpu.pipeline_mode<synchronous>, transform_indices = @transform_7, window_bounds = array<i64: 1, 64>}, {pipeline_mode = #tpu.pipeline_mode<synchronous>, transform_indices = @transform_8, window_bounds = array<i64: 16, 8>}, {pipeline_mode = #tpu.pipeline_mode<synchronous>, transform_indices = @transform_9, window_bounds = array<i64: 16, 1>}, {pipeline_mode = #tpu.pipeline_mode<synchronous>, transform_indices = @transform_10, window_bounds = array<i64: 16, 48>}, {pipeline_mode = #tpu.pipeline_mode<synchronous>, transform_indices = @transform_11, window_bounds = array<i64: 1, 16>}, {pipeline_mode = #tpu.pipeline_mode<synchronous>, transform_indices = @transform_12, window_bounds = array<i64: 1, 8>}, {pipeline_mode = #tpu.pipeline_mode<synchronous>, transform_indices = @transform_13, window_bounds = array<i64: 1, 8>}, {pipeline_mode = #tpu.pipeline_mode<synchronous>, transform_indices = @transform_14, window_bounds = array<i64: 16, 8>}]} {
    %c0 = arith.constant 0 : index
    %c0_0 = arith.constant 0 : index
    %0 = vector.load %arg4[%c0, %c0_0] : memref<32x8xf32, #tpu.memory_space<vmem>>, vector<32x8xf32>
    %c0_1 = arith.constant 0 : index
    %c0_2 = arith.constant 0 : index
    %1 = vector.load %arg5[%c0_1, %c0_2] : memref<8x16xf32, #tpu.memory_space<vmem>>, vector<8x16xf32>
    %cst = arith.constant dense<0.000000e+00> : vector<32x16xf32>
    %2 = tpu.matmul %0, %1, %cst {dimension_numbers = #tpu.dot_dimension_numbers<[1], [0], [0], [1], [0, 0, 1, 1], [], []>} : vector<32x8xf32>, vector<8x16xf32>, vector<32x16xf32> -> vector<32x16xf32>
    %c0_3 = arith.constant 0 : index
    %c0_4 = arith.constant 0 : index
    %3 = vector.load %arg6[%c0_3, %c0_4] : memref<1x16xf32, #tpu.memory_space<vmem>>, vector<1x16xf32>
    %4 = vector.broadcast %3 : vector<1x16xf32> to vector<32x16xf32>
    %5 = arith.addf %2, %4 : vector<32x16xf32>
    %cst_5 = arith.constant 0.000000e+00 : f32
    %6 = vector.broadcast %cst_5 : f32 to vector<32x16xf32>
    %7 = arith.maximumf %5, %6 : vector<32x16xf32>
    %c0_6 = arith.constant 0 : index
    %c0_7 = arith.constant 0 : index
    %8 = vector.load %arg7[%c0_6, %c0_7] : memref<16x64xf32, #tpu.memory_space<vmem>>, vector<16x64xf32>
    %cst_8 = arith.constant dense<0.000000e+00> : vector<32x64xf32>
    %9 = tpu.matmul %7, %8, %cst_8 {dimension_numbers = #tpu.dot_dimension_numbers<[1], [0], [0], [1], [0, 0, 1, 1], [], []>} : vector<32x16xf32>, vector<16x64xf32>, vector<32x64xf32> -> vector<32x64xf32>
    %c0_9 = arith.constant 0 : index
    %c0_10 = arith.constant 0 : index
    %10 = vector.load %arg8[%c0_9, %c0_10] : memref<1x64xf32, #tpu.memory_space<vmem>>, vector<1x64xf32>
    %11 = vector.broadcast %10 : vector<1x64xf32> to vector<32x64xf32>
    %12 = arith.addf %9, %11 : vector<32x64xf32>
    %13 = vector.extract_strided_slice %12 {offsets = [0, 0], sizes = [32, 8], strides = [1, 1]} : vector<32x64xf32> to vector<32x8xf32>
    %c0_11 = arith.constant 0 : index
    %c0_12 = arith.constant 0 : index
    %c0_13 = arith.constant 0 : index
    %14 = vector.load %arg16[%c0_11, %c0_12, %c0_13] : memref<8x32x8xf32, #tpu.memory_space<vmem>>, vector<1x32x8xf32>
    %15 = vector.shape_cast %14 : vector<1x32x8xf32> to vector<32x8xf32>
    %16 = vector.shape_cast %13 : vector<32x8xf32> to vector<1x32x8xf32>
    tpu.vector_store %arg16[%c0_11, %c0_12, %c0_13], %16 {strides = array<i32>} : memref<8x32x8xf32, #tpu.memory_space<vmem>>, vector<1x32x8xf32>,
    %17 = vector.extract_strided_slice %12 {offsets = [0, 8], sizes = [32, 8], strides = [1, 1]} : vector<32x64xf32> to vector<32x8xf32>
    %c1 = arith.constant 1 : index
    %c0_14 = arith.constant 0 : index
    %c0_15 = arith.constant 0 : index
    %18 = vector.load %arg16[%c1, %c0_14, %c0_15] : memref<8x32x8xf32, #tpu.memory_space<vmem>>, vector<1x32x8xf32>
    %19 = vector.shape_cast %18 : vector<1x32x8xf32> to vector<32x8xf32>
    %20 = vector.shape_cast %17 : vector<32x8xf32> to vector<1x32x8xf32>
    tpu.vector_store %arg16[%c1, %c0_14, %c0_15], %20 {strides = array<i32>} : memref<8x32x8xf32, #tpu.memory_space<vmem>>, vector<1x32x8xf32>,
    %21 = vector.extract_strided_slice %12 {offsets = [0, 16], sizes = [32, 8], strides = [1, 1]} : vector<32x64xf32> to vector<32x8xf32>
    %c2 = arith.constant 2 : index
    %c0_16 = arith.constant 0 : index
    %c0_17 = arith.constant 0 : index
    %22 = vector.load %arg16[%c2, %c0_16, %c0_17] : memref<8x32x8xf32, #tpu.memory_space<vmem>>, vector<1x32x8xf32>
    %23 = vector.shape_cast %22 : vector<1x32x8xf32> to vector<32x8xf32>
    %24 = vector.shape_cast %21 : vector<32x8xf32> to vector<1x32x8xf32>
    tpu.vector_store %arg16[%c2, %c0_16, %c0_17], %24 {strides = array<i32>} : memref<8x32x8xf32, #tpu.memory_space<vmem>>, vector<1x32x8xf32>,
    %25 = vector.extract_strided_slice %12 {offsets = [0, 24], sizes = [32, 8], strides = [1, 1]} : vector<32x64xf32> to vector<32x8xf32>
    %c3 = arith.constant 3 : index
    %c0_18 = arith.constant 0 : index
    %c0_19 = arith.constant 0 : index
    %26 = vector.load %arg16[%c3, %c0_18, %c0_19] : memref<8x32x8xf32, #tpu.memory_space<vmem>>, vector<1x32x8xf32>
    %27 = vector.shape_cast %26 : vector<1x32x8xf32> to vector<32x8xf32>
    %28 = vector.shape_cast %25 : vector<32x8xf32> to vector<1x32x8xf32>
    tpu.vector_store %arg16[%c3, %c0_18, %c0_19], %28 {strides = array<i32>} : memref<8x32x8xf32, #tpu.memory_space<vmem>>, vector<1x32x8xf32>,
    %29 = vector.extract_strided_slice %12 {offsets = [0, 32], sizes = [32, 8], strides = [1, 1]} : vector<32x64xf32> to vector<32x8xf32>
    %c4 = arith.constant 4 : index
    %c0_20 = arith.constant 0 : index
    %c0_21 = arith.constant 0 : index
    %30 = vector.load %arg16[%c4, %c0_20, %c0_21] : memref<8x32x8xf32, #tpu.memory_space<vmem>>, vector<1x32x8xf32>
    %31 = vector.shape_cast %30 : vector<1x32x8xf32> to vector<32x8xf32>
    %32 = vector.shape_cast %29 : vector<32x8xf32> to vector<1x32x8xf32>
    tpu.vector_store %arg16[%c4, %c0_20, %c0_21], %32 {strides = array<i32>} : memref<8x32x8xf32, #tpu.memory_space<vmem>>, vector<1x32x8xf32>,
    %33 = vector.extract_strided_slice %12 {offsets = [0, 40], sizes = [32, 8], strides = [1, 1]} : vector<32x64xf32> to vector<32x8xf32>
    %c5 = arith.constant 5 : index
    %c0_22 = arith.constant 0 : index
    %c0_23 = arith.constant 0 : index
    %34 = vector.load %arg16[%c5, %c0_22, %c0_23] : memref<8x32x8xf32, #tpu.memory_space<vmem>>, vector<1x32x8xf32>
    %35 = vector.shape_cast %34 : vector<1x32x8xf32> to vector<32x8xf32>
    %36 = vector.shape_cast %33 : vector<32x8xf32> to vector<1x32x8xf32>
    tpu.vector_store %arg16[%c5, %c0_22, %c0_23], %36 {strides = array<i32>} : memref<8x32x8xf32, #tpu.memory_space<vmem>>, vector<1x32x8xf32>,
    %37 = vector.extract_strided_slice %12 {offsets = [0, 48], sizes = [32, 8], strides = [1, 1]} : vector<32x64xf32> to vector<32x8xf32>
    %c6 = arith.constant 6 : index
    %c0_24 = arith.constant 0 : index
    %c0_25 = arith.constant 0 : index
    %38 = vector.load %arg16[%c6, %c0_24, %c0_25] : memref<8x32x8xf32, #tpu.memory_space<vmem>>, vector<1x32x8xf32>
    %39 = vector.shape_cast %38 : vector<1x32x8xf32> to vector<32x8xf32>
    %40 = vector.shape_cast %37 : vector<32x8xf32> to vector<1x32x8xf32>
    tpu.vector_store %arg16[%c6, %c0_24, %c0_25], %40 {strides = array<i32>} : memref<8x32x8xf32, #tpu.memory_space<vmem>>, vector<1x32x8xf32>,
    %41 = vector.extract_strided_slice %12 {offsets = [0, 56], sizes = [32, 8], strides = [1, 1]} : vector<32x64xf32> to vector<32x8xf32>
    %c7 = arith.constant 7 : index
    %c0_26 = arith.constant 0 : index
    %c0_27 = arith.constant 0 : index
    %42 = vector.load %arg16[%c7, %c0_26, %c0_27] : memref<8x32x8xf32, #tpu.memory_space<vmem>>, vector<1x32x8xf32>
    %43 = vector.shape_cast %42 : vector<1x32x8xf32> to vector<32x8xf32>
    %44 = vector.shape_cast %41 : vector<32x8xf32> to vector<1x32x8xf32>
    tpu.vector_store %arg16[%c7, %c0_26, %c0_27], %44 {strides = array<i32>} : memref<8x32x8xf32, #tpu.memory_space<vmem>>, vector<1x32x8xf32>,
    %45 = tpu.iota {dimensions = array<i32: 0>} : vector<16x32xi32>
    %c0_28 = arith.constant 0 : index
    %c0_29 = arith.constant 0 : index
    %46 = vector.load %arg3[%c0_28, %c0_29] : memref<1x32xi32, #tpu.memory_space<vmem>>, vector<1x32xi32>
    %47 = vector.shape_cast %46 : vector<1x32xi32> to vector<1x32xi32>
    %48 = vector.broadcast %47 : vector<1x32xi32> to vector<16x32xi32>
    %49 = arith.cmpi eq, %45, %48 : vector<16x32xi32>
    %50 = arith.extui %49 : vector<16x32xi1> to vector<16x32xi32>
    %51 = arith.sitofp %50 : vector<16x32xi32> to vector<16x32xf32>
    %52 = tpu.iota {dimensions = array<i32: 1>} : vector<32x16xi32>
    %c0_30 = arith.constant 0 : index
    %c0_31 = arith.constant 0 : index
    %53 = vector.load %arg1[%c0_30, %c0_31] : memref<32x1xi32, #tpu.memory_space<vmem>>, vector<32x1xi32>
    %54 = vector.shape_cast %53 : vector<32x1xi32> to vector<32x1xi32>
    %55 = vector.broadcast %54 : vector<32x1xi32> to vector<32x16xi32>
    %56 = arith.cmpi eq, %52, %55 : vector<32x16xi32>
    %57 = arith.extui %56 : vector<32x16xi1> to vector<32x16xi32>
    %58 = arith.sitofp %57 : vector<32x16xi32> to vector<32x16xf32>
    %c0_32 = arith.constant 0 : index
    %c0_33 = arith.constant 0 : index
    %59 = vector.load %arg11[%c0_32, %c0_33] : memref<16x48xf32, #tpu.memory_space<vmem>>, vector<16x48xf32>
    %c0_34 = arith.constant 0 : index
    %c0_35 = arith.constant 0 : index
    %60 = vector.load %arg10[%c0_34, %c0_35] : memref<16x1xf32, #tpu.memory_space<vmem>>, vector<16x1xf32>
    %61 = vector.shape_cast %60 : vector<16x1xf32> to vector<16x1xf32>
    %62 = vector.broadcast %61 : vector<16x1xf32> to vector<16x8xf32>
    %c0_36 = arith.constant 0 : index
    %c0_37 = arith.constant 0 : index
    %63 = vector.load %arg12[%c0_36, %c0_37] : memref<1x16xf32, #tpu.memory_space<vmem>>, vector<1x16xf32>
    %64 = vector.shape_cast %63 : vector<1x16xf32> to vector<1x16xf32>
    %65 = vector.broadcast %64 : vector<1x16xf32> to vector<16x16xf32>
    %c0_38 = arith.constant 0 : index
    %c0_39 = arith.constant 0 : index
    %66 = vector.load %arg13[%c0_38, %c0_39] : memref<1x8xf32, #tpu.memory_space<vmem>>, vector<1x8xf32>
    %67 = vector.shape_cast %66 : vector<1x8xf32> to vector<1x8xf32>
    %68 = vector.broadcast %67 : vector<1x8xf32> to vector<16x8xf32>
    %c0_40 = arith.constant 0 : index
    %c0_41 = arith.constant 0 : index
    %69 = vector.load %arg14[%c0_40, %c0_41] : memref<1x8xf32, #tpu.memory_space<vmem>>, vector<1x8xf32>
    %70 = vector.shape_cast %69 : vector<1x8xf32> to vector<1x8xf32>
    %71 = vector.broadcast %70 : vector<1x8xf32> to vector<16x8xf32>
    %c0_42 = arith.constant 0 : index
    %c0_43 = arith.constant 0 : index
    %72 = vector.load %arg9[%c0_42, %c0_43] : memref<16x8xf32, #tpu.memory_space<vmem>>, vector<16x8xf32>
    %c0_i32 = arith.constant 0 : i32
    %c3_i32 = arith.constant 3 : i32
    %73 = arith.addi %c0_i32, %c3_i32 : i32
    %c1_i32 = arith.constant 1 : i32
    %74 = scf.for %arg17 = %c0_i32 to %73 step %c1_i32 iter_args(%arg18 = %72) -> (vector<16x8xf32>)  : i32 {
      %cst_46 = arith.constant dense<0.000000e+00> : vector<32x8xf32>
      %76 = tpu.matmul %58, %arg18, %cst_46 {dimension_numbers = #tpu.dot_dimension_numbers<[1], [0], [0], [1], [0, 0, 1, 1], [], []>} : vector<32x16xf32>, vector<16x8xf32>, vector<32x8xf32> -> vector<32x8xf32>
      %77 = vector.extract_strided_slice %76 {offsets = [0, 0], sizes = [32, 1], strides = [1, 1]} : vector<32x8xf32> to vector<32x1xf32>
      %c0_47 = arith.constant 0 : index
      %c0_48 = arith.constant 0 : index
      %c0_49 = arith.constant 0 : index
      %78 = vector.load %arg16[%c0_47, %c0_48, %c0_49] : memref<8x32x8xf32, #tpu.memory_space<vmem>>, vector<1x32x8xf32>
      %79 = vector.shape_cast %78 : vector<1x32x8xf32> to vector<32x8xf32>
      %80 = vector.broadcast %77 : vector<32x1xf32> to vector<32x8xf32>
      %81 = arith.mulf %80, %79 : vector<32x8xf32>
      %82 = vector.extract_strided_slice %76 {offsets = [0, 1], sizes = [32, 1], strides = [1, 1]} : vector<32x8xf32> to vector<32x1xf32>
      %c1_50 = arith.constant 1 : index
      %c0_51 = arith.constant 0 : index
      %c0_52 = arith.constant 0 : index
      %83 = vector.load %arg16[%c1_50, %c0_51, %c0_52] : memref<8x32x8xf32, #tpu.memory_space<vmem>>, vector<1x32x8xf32>
      %84 = vector.shape_cast %83 : vector<1x32x8xf32> to vector<32x8xf32>
      %85 = vector.broadcast %82 : vector<32x1xf32> to vector<32x8xf32>
      %86 = arith.mulf %85, %84 : vector<32x8xf32>
      %87 = arith.addf %81, %86 : vector<32x8xf32>
      %88 = vector.extract_strided_slice %76 {offsets = [0, 2], sizes = [32, 1], strides = [1, 1]} : vector<32x8xf32> to vector<32x1xf32>
      %c2_53 = arith.constant 2 : index
      %c0_54 = arith.constant 0 : index
      %c0_55 = arith.constant 0 : index
      %89 = vector.load %arg16[%c2_53, %c0_54, %c0_55] : memref<8x32x8xf32, #tpu.memory_space<vmem>>, vector<1x32x8xf32>
      %90 = vector.shape_cast %89 : vector<1x32x8xf32> to vector<32x8xf32>
      %91 = vector.broadcast %88 : vector<32x1xf32> to vector<32x8xf32>
      %92 = arith.mulf %91, %90 : vector<32x8xf32>
      %93 = arith.addf %87, %92 : vector<32x8xf32>
      %94 = vector.extract_strided_slice %76 {offsets = [0, 3], sizes = [32, 1], strides = [1, 1]} : vector<32x8xf32> to vector<32x1xf32>
      %c3_56 = arith.constant 3 : index
      %c0_57 = arith.constant 0 : index
      %c0_58 = arith.constant 0 : index
      %95 = vector.load %arg16[%c3_56, %c0_57, %c0_58] : memref<8x32x8xf32, #tpu.memory_space<vmem>>, vector<1x32x8xf32>
      %96 = vector.shape_cast %95 : vector<1x32x8xf32> to vector<32x8xf32>
      %97 = vector.broadcast %94 : vector<32x1xf32> to vector<32x8xf32>
      %98 = arith.mulf %97, %96 : vector<32x8xf32>
      %99 = arith.addf %93, %98 : vector<32x8xf32>
      %100 = vector.extract_strided_slice %76 {offsets = [0, 4], sizes = [32, 1], strides = [1, 1]} : vector<32x8xf32> to vector<32x1xf32>
      %c4_59 = arith.constant 4 : index
      %c0_60 = arith.constant 0 : index
      %c0_61 = arith.constant 0 : index
      %101 = vector.load %arg16[%c4_59, %c0_60, %c0_61] : memref<8x32x8xf32, #tpu.memory_space<vmem>>, vector<1x32x8xf32>
      %102 = vector.shape_cast %101 : vector<1x32x8xf32> to vector<32x8xf32>
      %103 = vector.broadcast %100 : vector<32x1xf32> to vector<32x8xf32>
      %104 = arith.mulf %103, %102 : vector<32x8xf32>
      %105 = arith.addf %99, %104 : vector<32x8xf32>
      %106 = vector.extract_strided_slice %76 {offsets = [0, 5], sizes = [32, 1], strides = [1, 1]} : vector<32x8xf32> to vector<32x1xf32>
      %c5_62 = arith.constant 5 : index
      %c0_63 = arith.constant 0 : index
      %c0_64 = arith.constant 0 : index
      %107 = vector.load %arg16[%c5_62, %c0_63, %c0_64] : memref<8x32x8xf32, #tpu.memory_space<vmem>>, vector<1x32x8xf32>
      %108 = vector.shape_cast %107 : vector<1x32x8xf32> to vector<32x8xf32>
      %109 = vector.broadcast %106 : vector<32x1xf32> to vector<32x8xf32>
      %110 = arith.mulf %109, %108 : vector<32x8xf32>
      %111 = arith.addf %105, %110 : vector<32x8xf32>
      %112 = vector.extract_strided_slice %76 {offsets = [0, 6], sizes = [32, 1], strides = [1, 1]} : vector<32x8xf32> to vector<32x1xf32>
      %c6_65 = arith.constant 6 : index
      %c0_66 = arith.constant 0 : index
      %c0_67 = arith.constant 0 : index
      %113 = vector.load %arg16[%c6_65, %c0_66, %c0_67] : memref<8x32x8xf32, #tpu.memory_space<vmem>>, vector<1x32x8xf32>
      %114 = vector.shape_cast %113 : vector<1x32x8xf32> to vector<32x8xf32>
      %115 = vector.broadcast %112 : vector<32x1xf32> to vector<32x8xf32>
      %116 = arith.mulf %115, %114 : vector<32x8xf32>
      %117 = arith.addf %111, %116 : vector<32x8xf32>
      %118 = vector.extract_strided_slice %76 {offsets = [0, 7], sizes = [32, 1], strides = [1, 1]} : vector<32x8xf32> to vector<32x1xf32>
      %c7_68 = arith.constant 7 : index
      %c0_69 = arith.constant 0 : index
      %c0_70 = arith.constant 0 : index
      %119 = vector.load %arg16[%c7_68, %c0_69, %c0_70] : memref<8x32x8xf32, #tpu.memory_space<vmem>>, vector<1x32x8xf32>
      %120 = vector.shape_cast %119 : vector<1x32x8xf32> to vector<32x8xf32>
      %121 = vector.broadcast %118 : vector<32x1xf32> to vector<32x8xf32>
      %122 = arith.mulf %121, %120 : vector<32x8xf32>
      %123 = arith.addf %117, %122 : vector<32x8xf32>
      %cst_71 = arith.constant dense<0.000000e+00> : vector<16x8xf32>
      %124 = tpu.matmul %51, %123, %cst_71 {dimension_numbers = #tpu.dot_dimension_numbers<[1], [0], [0], [1], [0, 0, 1, 1], [], []>} : vector<16x32xf32>, vector<32x8xf32>, vector<16x8xf32> -> vector<16x8xf32>
      %125 = arith.mulf %124, %62 : vector<16x8xf32>
      %126 = tpu.concatenate %125, %arg18 in 1 : vector<16x8xf32>, vector<16x8xf32> -> vector<16x16xf32>
      %cst_72 = arith.constant dense<0.000000e+00> : vector<16x48xf32>
      %127 = tpu.matmul %126, %59, %cst_72 {dimension_numbers = #tpu.dot_dimension_numbers<[1], [0], [0], [1], [0, 0, 1, 1], [], []>} : vector<16x16xf32>, vector<16x48xf32>, vector<16x48xf32> -> vector<16x48xf32>
      %128 = vector.extract_strided_slice %127 {offsets = [0, 0], sizes = [16, 24], strides = [1, 1]} : vector<16x48xf32> to vector<16x24xf32>
      %129 = vector.extract_strided_slice %127 {offsets = [0, 24], sizes = [16, 24], strides = [1, 1]} : vector<16x48xf32> to vector<16x24xf32>
      %130 = vector.extract_strided_slice %128 {offsets = [0, 0], sizes = [16, 16], strides = [1, 1]} : vector<16x24xf32> to vector<16x16xf32>
      %131 = vector.extract_strided_slice %129 {offsets = [0, 0], sizes = [16, 16], strides = [1, 1]} : vector<16x24xf32> to vector<16x16xf32>
      %132 = arith.addf %130, %131 : vector<16x16xf32>
      %133 = arith.addf %132, %65 : vector<16x16xf32>
      %134 = arith.negf %133 : vector<16x16xf32>
      %135 = math.exp %134 : vector<16x16xf32>
      %cst_73 = arith.constant 1.000000e+00 : f32
      %136 = vector.broadcast %cst_73 : f32 to vector<16x16xf32>
      %137 = arith.addf %136, %135 : vector<16x16xf32>
      %138 = arith.divf %136, %137 : vector<16x16xf32>
      %139 = vector.extract_strided_slice %138 {offsets = [0, 0], sizes = [16, 8], strides = [1, 1]} : vector<16x16xf32> to vector<16x8xf32>
      %140 = vector.extract_strided_slice %138 {offsets = [0, 8], sizes = [16, 8], strides = [1, 1]} : vector<16x16xf32> to vector<16x8xf32>
      %141 = vector.extract_strided_slice %128 {offsets = [0, 16], sizes = [16, 8], strides = [1, 1]} : vector<16x24xf32> to vector<16x8xf32>
      %142 = arith.addf %141, %68 : vector<16x8xf32>
      %143 = vector.extract_strided_slice %129 {offsets = [0, 16], sizes = [16, 8], strides = [1, 1]} : vector<16x24xf32> to vector<16x8xf32>
      %144 = arith.addf %143, %71 : vector<16x8xf32>
      %145 = arith.mulf %139, %144 : vector<16x8xf32>
      %146 = arith.addf %142, %145 : vector<16x8xf32>
      %147 = math.tanh %146 : vector<16x8xf32>
      %cst_74 = arith.constant 1.000000e+00 : f32
      %148 = vector.broadcast %cst_74 : f32 to vector<16x8xf32>
      %149 = arith.subf %148, %140 : vector<16x8xf32>
      %150 = arith.mulf %149, %147 : vector<16x8xf32>
      %151 = arith.mulf %140, %arg18 : vector<16x8xf32>
      %152 = arith.addf %150, %151 : vector<16x8xf32>
      scf.yield %152 : vector<16x8xf32>
    }
    %c0_44 = arith.constant 0 : index
    %c0_45 = arith.constant 0 : index
    %75 = vector.load %arg15[%c0_44, %c0_45] : memref<16x8xf32, #tpu.memory_space<vmem>>, vector<16x8xf32>
    tpu.vector_store %arg15[%c0_44, %c0_45], %74 {strides = array<i32>} : memref<16x8xf32, #tpu.memory_space<vmem>>, vector<16x8xf32>,
    return
  }
  func.func @transform_0(%arg0: i32) -> (i32, i32) {
    %c0_i32 = arith.constant 0 : i32
    %c0_i32_0 = arith.constant 0 : i32
    %c0_i32_1 = arith.constant 0 : i32
    return %c0_i32, %c0_i32_0 : i32, i32
  }
  func.func @transform_1(%arg0: i32) -> (i32, i32) {
    %c0_i32 = arith.constant 0 : i32
    %c0_i32_0 = arith.constant 0 : i32
    %c0_i32_1 = arith.constant 0 : i32
    return %c0_i32, %c0_i32_0 : i32, i32
  }
  func.func @transform_2(%arg0: i32) -> (i32, i32) {
    %c0_i32 = arith.constant 0 : i32
    %c0_i32_0 = arith.constant 0 : i32
    %c0_i32_1 = arith.constant 0 : i32
    return %c0_i32, %c0_i32_0 : i32, i32
  }
  func.func @transform_3(%arg0: i32) -> (i32, i32) {
    %c0_i32 = arith.constant 0 : i32
    %c0_i32_0 = arith.constant 0 : i32
    %c0_i32_1 = arith.constant 0 : i32
    return %c0_i32, %c0_i32_0 : i32, i32
  }
  func.func @transform_4(%arg0: i32) -> (i32, i32) {
    %c0_i32 = arith.constant 0 : i32
    %c0_i32_0 = arith.constant 0 : i32
    %c0_i32_1 = arith.constant 0 : i32
    return %c0_i32, %c0_i32_0 : i32, i32
  }
  func.func @transform_5(%arg0: i32) -> (i32, i32) {
    %c0_i32 = arith.constant 0 : i32
    %c0_i32_0 = arith.constant 0 : i32
    %c0_i32_1 = arith.constant 0 : i32
    return %c0_i32, %c0_i32_0 : i32, i32
  }
  func.func @transform_6(%arg0: i32) -> (i32, i32) {
    %c0_i32 = arith.constant 0 : i32
    %c0_i32_0 = arith.constant 0 : i32
    %c0_i32_1 = arith.constant 0 : i32
    return %c0_i32, %c0_i32_0 : i32, i32
  }
  func.func @transform_7(%arg0: i32) -> (i32, i32) {
    %c0_i32 = arith.constant 0 : i32
    %c0_i32_0 = arith.constant 0 : i32
    %c0_i32_1 = arith.constant 0 : i32
    return %c0_i32, %c0_i32_0 : i32, i32
  }
  func.func @transform_8(%arg0: i32) -> (i32, i32) {
    %c0_i32 = arith.constant 0 : i32
    %c0_i32_0 = arith.constant 0 : i32
    %c0_i32_1 = arith.constant 0 : i32
    return %c0_i32, %c0_i32_0 : i32, i32
  }
  func.func @transform_9(%arg0: i32) -> (i32, i32) {
    %c0_i32 = arith.constant 0 : i32
    %c0_i32_0 = arith.constant 0 : i32
    %c0_i32_1 = arith.constant 0 : i32
    return %c0_i32, %c0_i32_0 : i32, i32
  }
  func.func @transform_10(%arg0: i32) -> (i32, i32) {
    %c0_i32 = arith.constant 0 : i32
    %c0_i32_0 = arith.constant 0 : i32
    %c0_i32_1 = arith.constant 0 : i32
    return %c0_i32, %c0_i32_0 : i32, i32
  }
  func.func @transform_11(%arg0: i32) -> (i32, i32) {
    %c0_i32 = arith.constant 0 : i32
    %c0_i32_0 = arith.constant 0 : i32
    %c0_i32_1 = arith.constant 0 : i32
    return %c0_i32, %c0_i32_0 : i32, i32
  }
  func.func @transform_12(%arg0: i32) -> (i32, i32) {
    %c0_i32 = arith.constant 0 : i32
    %c0_i32_0 = arith.constant 0 : i32
    %c0_i32_1 = arith.constant 0 : i32
    return %c0_i32, %c0_i32_0 : i32, i32
  }
  func.func @transform_13(%arg0: i32) -> (i32, i32) {
    %c0_i32 = arith.constant 0 : i32
    %c0_i32_0 = arith.constant 0 : i32
    %c0_i32_1 = arith.constant 0 : i32
    return %c0_i32, %c0_i32_0 : i32, i32
  }
  func.func @transform_14(%arg0: i32) -> (i32, i32) {
    %c0_i32 = arith.constant 0 : i32
    %c0_i32_0 = arith.constant 0 : i32
    %c0_i32_1 = arith.constant 0 : i32
    return %c0_i32, %c0_i32_0 : i32, i32
  }
}

</mosaic_0001>

<llo_original>
// kernel: tpu_custom_call.1
$region0: #{tpu_custom_call.1}
  #allocation0 [shape = 'u32[]', space=smem, size = 0x4, offset = 0x4, fixed_abs, tag = 'smem constant byte address 0x4 - core index']
  #allocation1 [shape = 'u32[72,128]{1,0:T(1,128)}', space=vmem, size = 0x9000, scoped, tag = 'internal scratch']
  #allocation2 [shape = 'f32[8,32,8]{2,1,0:T(8,128)}', space=vmem, size = 0x20000, scoped, tag = 'scratch operand']
  %s0 = inlined_call_operand.vmem [shape: s32[32,1], index: 0, kind: input, shape index: {}]
  %s1 = inlined_call_operand.vmem [shape: s32[1,32], index: 1, kind: input, shape index: {}]
  %s2 = inlined_call_operand.vmem [shape: s32[1,32], index: 2, kind: input, shape index: {}]
  %s3 = inlined_call_operand.vmem [shape: f32[32,8], index: 3, kind: input, shape index: {}]
  %s4 = inlined_call_operand.vmem [shape: f32[8,16], index: 4, kind: input, shape index: {}]
  %s5 = inlined_call_operand.vmem [shape: f32[1,16], index: 5, kind: input, shape index: {}]
  %s6 = inlined_call_operand.vmem [shape: f32[16,64], index: 6, kind: input, shape index: {}]
  %s7 = inlined_call_operand.vmem [shape: f32[1,64], index: 7, kind: input, shape index: {}]
  %s8 = inlined_call_operand.vmem [shape: f32[16,8], index: 8, kind: input, shape index: {}]
  %s9 = inlined_call_operand.vmem [shape: f32[16,1], index: 9, kind: input, shape index: {}]
  %s10 = inlined_call_operand.vmem [shape: f32[16,48], index: 10, kind: input, shape index: {}]
  %s11 = inlined_call_operand.vmem [shape: f32[1,16], index: 11, kind: input, shape index: {}]
  %s12 = inlined_call_operand.vmem [shape: f32[1,8], index: 12, kind: input, shape index: {}]
  %s13 = inlined_call_operand.vmem [shape: f32[1,8], index: 13, kind: input, shape index: {}]
  %s14 = inlined_call_operand.vmem [shape: f32[16,8], index: 14, kind: output, shape index: {}]
  %s15 = sld [smem:[#allocation0]]
  $region73: #{tpu_custom_call.1} parent=0
    _
  %s17 = ssub.s32 1, %s15
  %s18 = scalar_select 0, %s17, %s15
  // Predicated region
  $region2: #{tpu_custom_call.1} parent=0 // pred_check
    _
  $region3: #{tpu_custom_call.1} parent=0 // pred_check_branch
    %20 = sbr.rel (0) target = $region5
  $region4: #{tpu_custom_call.1} parent=0 // pred_region
    _
  $region5: #{tpu_custom_call.1} parent=0 // pred_fallthru
    _
  // Predicated region
  $region6: #{tpu_custom_call.1} parent=0 // pred_check
    _
  $region7: #{tpu_custom_call.1} parent=0 // pred_check_branch
    %22 = sbr.rel (0) target = $region9
  $region8: #{tpu_custom_call.1} parent=0 // pred_region
    _
  $region9: #{tpu_custom_call.1} parent=0 // pred_fallthru
    _
  // Predicated region
  $region10: #{tpu_custom_call.1} parent=0 // pred_check
    _
  $region11: #{tpu_custom_call.1} parent=0 // pred_check_branch
    %24 = sbr.rel (0) target = $region13
  $region12: #{tpu_custom_call.1} parent=0 // pred_region
    _
  $region13: #{tpu_custom_call.1} parent=0 // pred_fallthru
    _
  // Predicated region
  $region14: #{tpu_custom_call.1} parent=0 // pred_check
    _
  $region15: #{tpu_custom_call.1} parent=0 // pred_check_branch
    %26 = sbr.rel (0) target = $region17
  $region16: #{tpu_custom_call.1} parent=0 // pred_region
    _
  $region17: #{tpu_custom_call.1} parent=0 // pred_fallthru
    _
  // Predicated region
  $region18: #{tpu_custom_call.1} parent=0 // pred_check
    _
  $region19: #{tpu_custom_call.1} parent=0 // pred_check_branch
    %28 = sbr.rel (0) target = $region21
  $region20: #{tpu_custom_call.1} parent=0 // pred_region
    _
  $region21: #{tpu_custom_call.1} parent=0 // pred_fallthru
    _
  // Predicated region
  $region22: #{tpu_custom_call.1} parent=0 // pred_check
    _
  $region23: #{tpu_custom_call.1} parent=0 // pred_check_branch
    %30 = sbr.rel (0) target = $region25
  $region24: #{tpu_custom_call.1} parent=0 // pred_region
    _
  $region25: #{tpu_custom_call.1} parent=0 // pred_fallthru
    _
  // Predicated region
  $region26: #{tpu_custom_call.1} parent=0 // pred_check
    _
  $region27: #{tpu_custom_call.1} parent=0 // pred_check_branch
    %32 = sbr.rel (0) target = $region29
  $region28: #{tpu_custom_call.1} parent=0 // pred_region
    _
  $region29: #{tpu_custom_call.1} parent=0 // pred_fallthru
    _
  // Predicated region
  $region30: #{tpu_custom_call.1} parent=0 // pred_check
    _
  $region31: #{tpu_custom_call.1} parent=0 // pred_check_branch
    %34 = sbr.rel (0) target = $region33
  $region32: #{tpu_custom_call.1} parent=0 // pred_region
    _
  $region33: #{tpu_custom_call.1} parent=0 // pred_fallthru
    _
  // Predicated region
  $region34: #{tpu_custom_call.1} parent=0 // pred_check
    _
  $region35: #{tpu_custom_call.1} parent=0 // pred_check_branch
    %36 = sbr.rel (0) target = $region37
  $region36: #{tpu_custom_call.1} parent=0 // pred_region
    _
  $region37: #{tpu_custom_call.1} parent=0 // pred_fallthru
    _
  // Predicated region
  $region38: #{tpu_custom_call.1} parent=0 // pred_check
    _
  $region39: #{tpu_custom_call.1} parent=0 // pred_check_branch
    %38 = sbr.rel (0) target = $region41
  $region40: #{tpu_custom_call.1} parent=0 // pred_region
    _
  $region41: #{tpu_custom_call.1} parent=0 // pred_fallthru
    _
  // Predicated region
  $region42: #{tpu_custom_call.1} parent=0 // pred_check
    _
  $region43: #{tpu_custom_call.1} parent=0 // pred_check_branch
    %40 = sbr.rel (0) target = $region45
  $region44: #{tpu_custom_call.1} parent=0 // pred_region
    _
  $region45: #{tpu_custom_call.1} parent=0 // pred_fallthru
    _
  // Predicated region
  $region46: #{tpu_custom_call.1} parent=0 // pred_check
    _
  $region47: #{tpu_custom_call.1} parent=0 // pred_check_branch
    %42 = sbr.rel (0) target = $region49
  $region48: #{tpu_custom_call.1} parent=0 // pred_region
    _
  $region49: #{tpu_custom_call.1} parent=0 // pred_fallthru
    _
  // Predicated region
  $region50: #{tpu_custom_call.1} parent=0 // pred_check
    _
  $region51: #{tpu_custom_call.1} parent=0 // pred_check_branch
    %44 = sbr.rel (0) target = $region53
  $region52: #{tpu_custom_call.1} parent=0 // pred_region
    _
  $region53: #{tpu_custom_call.1} parent=0 // pred_fallthru
    _
  // Predicated region
  $region54: #{tpu_custom_call.1} parent=0 // pred_check
    _
  $region55: #{tpu_custom_call.1} parent=0 // pred_check_branch
    %46 = sbr.rel (0) target = $region57
  $region56: #{tpu_custom_call.1} parent=0 // pred_region
    _
  $region57: #{tpu_custom_call.1} parent=0 // pred_fallthru
    _
  %v47 = vld [vmem:[%s3] sm:$0xff]
  %v48 = vld [vmem:[%s3 + $0x8] sm:$0xff]
  %v49 = vld [vmem:[%s3 + $0x10] sm:$0xff]
  %v50 = vld [vmem:[%s3 + $0x18] sm:$0xff]
  %v51 = vld [vmem:[%s4] sm:$0xff]
  %v52 = vld [vmem:[%s5] sm:$0x1]
  %v54 = vperm.slane %v52, 0
  %vm56 = vcmask 64512
  %v58 = vsel %vm56, %v47, 0
  %v61 = vsel %vm56, %v48, 0
  %v64 = vsel %vm56, %v49, 0
  %v67 = vsel %vm56, %v50, 0
  %69 = vmatpush.msra.mxu0 0.0
  %70 = vmatpush.msra.mxu0 0.0
  %71 = vmatpush.msra.mxu0 0.0
  %72 = vmatpush.msra.mxu0 0.0
  %73 = vmatpush.msra.mxu0 0.0
  %74 = vmatpush.msra.mxu0 0.0
  %75 = vmatpush.msra.mxu0 0.0
  %76 = vmatpush.msra.mxu0 0.0
  %77 = vmatpush.msra.mxu0 0.0
  %78 = vmatpush.msra.mxu0 0.0
  %79 = vmatpush.msra.mxu0 0.0
  %80 = vmatpush.msra.mxu0 0.0
  %81 = vmatpush.msra.mxu0 0.0
  %82 = vmatpush.msra.mxu0 0.0
  %83 = vmatpush.msra.mxu0 0.0
  %84 = vmatpush.msra.mxu0 %v51
  %85 = vmatmul.f32.gmra.mxu0 %v58
  %v86 = vpop.f32.mrf.mxu0
  %v87 = vadd.f32 %v54, %v86
  %88 = vmatmul.f32.gmra.mxu0 %v61
  %v89 = vpop.f32.mrf.mxu0
  %v90 = vadd.f32 %v54, %v89
  %91 = vmatmul.f32.gmra.mxu0 %v64
  %v92 = vpop.f32.mrf.mxu0
  %v93 = vadd.f32 %v54, %v92
  %94 = vmatmul.f32.gmra.mxu0 %v67
  %v95 = vpop.f32.mrf.mxu0
  %v96 = vadd.f32 %v54, %v95
  %97 = vdwg.mxu0
  %v98 = vmax.f32 %v87, 0.0
  %v99 = vmax.f32 %v90, 0.0
  %v100 = vmax.f32 %v93, 0.0
  %v101 = vmax.f32 %v96, 0.0
  %v102 = vld [vmem:[%s6] sm:$0xff]
  %v103 = vld [vmem:[%s6 + $0x8] sm:$0xff]
  %v104 = vld [vmem:[%s7] sm:$0x1]
  %v106 = vperm.slane %v104, 0
  %vm108 = vcmask 130048
  %v110 = vsel %vm108, %v98, 0
  %v113 = vsel %vm108, %v99, 0
  %v116 = vsel %vm108, %v100, 0
  %v119 = vsel %vm108, %v101, 0
  %121 = vmatpush.msra.mxu0 0.0
  %122 = vmatpush.msra.mxu0 0.0
  %123 = vmatpush.msra.mxu0 0.0
  %124 = vmatpush.msra.mxu0 0.0
  %125 = vmatpush.msra.mxu0 0.0
  %126 = vmatpush.msra.mxu0 0.0
  %127 = vmatpush.msra.mxu0 0.0
  %128 = vmatpush.msra.mxu0 0.0
  %129 = vmatpush.msra.mxu0 0.0
  %130 = vmatpush.msra.mxu0 0.0
  %131 = vmatpush.msra.mxu0 0.0
  %132 = vmatpush.msra.mxu0 0.0
  %133 = vmatpush.msra.mxu0 0.0
  %134 = vmatpush.msra.mxu0 0.0
  %135 = vmatpush.msra.mxu0 %v103
  %136 = vmatpush.msra.mxu0 %v102
  %137 = vmatmul.f32.gmra.mxu0 %v110
  %v138 = vpop.f32.mrf.mxu0
  %v139 = vadd.f32 %v106, %v138
  %140 = vmatmul.f32.gmra.mxu0 %v113
  %v141 = vpop.f32.mrf.mxu0
  %v142 = vadd.f32 %v106, %v141
  %143 = vmatmul.f32.gmra.mxu0 %v116
  %v144 = vpop.f32.mrf.mxu0
  %v145 = vadd.f32 %v106, %v144
  %146 = vmatmul.f32.gmra.mxu0 %v119
  %v147 = vpop.f32.mrf.mxu0
  %v148 = vadd.f32 %v106, %v147
  %149 = vdwg.mxu0
  %150 = vst.msk [vmem:[#allocation2] sm:$0xff] %vm56, %v139
  %151 = vst.msk [vmem:[#allocation2 + $0x8] sm:$0xff] %vm56, %v142
  %152 = vst.msk [vmem:[#allocation2 + $0x10] sm:$0xff] %vm56, %v145
  %153 = vst.msk [vmem:[#allocation2 + $0x18] sm:$0xff] %vm56, %v148
  %158 = vrot.lane.b32.xlu0 %v139, 120
  %v159 = vpop.permute.xlu0 %158
  %160 = vrot.lane.b32.xlu0 %v142, 120
  %v161 = vpop.permute.xlu0 %160
  %162 = vrot.lane.b32.xlu0 %v145, 120
  %v163 = vpop.permute.xlu0 %162
  %164 = vrot.lane.b32.xlu0 %v148, 120
  %v165 = vpop.permute.xlu0 %164
  %s170 = scalar_lea.vmem [#allocation2], 32
  %171 = vst.msk [vmem:[%s170] sm:$0xff] %vm56, %v159
  %172 = vst.msk [vmem:[%s170 + $0x8] sm:$0xff] %vm56, %v161
  %173 = vst.msk [vmem:[%s170 + $0x10] sm:$0xff] %vm56, %v163
  %174 = vst.msk [vmem:[%s170 + $0x18] sm:$0xff] %vm56, %v165
  %175 = vrot.lane.b32.xlu0 %v139, 112
  %v176 = vpop.permute.xlu0 %175
  %177 = vrot.lane.b32.xlu0 %v142, 112
  %v178 = vpop.permute.xlu0 %177
  %179 = vrot.lane.b32.xlu0 %v145, 112
  %v180 = vpop.permute.xlu0 %179
  %181 = vrot.lane.b32.xlu0 %v148, 112
  %v182 = vpop.permute.xlu0 %181
  %s187 = scalar_lea.vmem [#allocation2], 64
  %188 = vst.msk [vmem:[%s187] sm:$0xff] %vm56, %v176
  %189 = vst.msk [vmem:[%s187 + $0x8] sm:$0xff] %vm56, %v178
  %190 = vst.msk [vmem:[%s187 + $0x10] sm:$0xff] %vm56, %v180
  %191 = vst.msk [vmem:[%s187 + $0x18] sm:$0xff] %vm56, %v182
  %192 = vrot.lane.b32.xlu0 %v139, 104
  %v193 = vpop.permute.xlu0 %192
  %194 = vrot.lane.b32.xlu0 %v142, 104
  %v195 = vpop.permute.xlu0 %194
  %196 = vrot.lane.b32.xlu0 %v145, 104
  %v197 = vpop.permute.xlu0 %196
  %198 = vrot.lane.b32.xlu0 %v148, 104
  %v199 = vpop.permute.xlu0 %198
  %s204 = scalar_lea.vmem [#allocation2], 96
  %205 = vst.msk [vmem:[%s204] sm:$0xff] %vm56, %v193
  %206 = vst.msk [vmem:[%s204 + $0x8] sm:$0xff] %vm56, %v195
  %207 = vst.msk [vmem:[%s204 + $0x10] sm:$0xff] %vm56, %v197
  %208 = vst.msk [vmem:[%s204 + $0x18] sm:$0xff] %vm56, %v199
  %209 = vrot.lane.b32.xlu0 %v139, 96
  %v210 = vpop.permute.xlu0 %209
  %211 = vrot.lane.b32.xlu0 %v142, 96
  %v212 = vpop.permute.xlu0 %211
  %213 = vrot.lane.b32.xlu0 %v145, 96
  %v214 = vpop.permute.xlu0 %213
  %215 = vrot.lane.b32.xlu0 %v148, 96
  %v216 = vpop.permute.xlu0 %215
  %s221 = scalar_lea.vmem [#allocation2], 128
  %222 = vst.msk [vmem:[%s221] sm:$0xff] %vm56, %v210
  %223 = vst.msk [vmem:[%s221 + $0x8] sm:$0xff] %vm56, %v212
  %224 = vst.msk [vmem:[%s221 + $0x10] sm:$0xff] %vm56, %v214
  %225 = vst.msk [vmem:[%s221 + $0x18] sm:$0xff] %vm56, %v216
  %226 = vrot.lane.b32.xlu0 %v139, 88
  %v227 = vpop.permute.xlu0 %226
  %228 = vrot.lane.b32.xlu0 %v142, 88
  %v229 = vpop.permute.xlu0 %228
  %230 = vrot.lane.b32.xlu0 %v145, 88
  %v231 = vpop.permute.xlu0 %230
  %232 = vrot.lane.b32.xlu0 %v148, 88
  %v233 = vpop.permute.xlu0 %232
  %s238 = scalar_lea.vmem [#allocation2], 160
  %239 = vst.msk [vmem:[%s238] sm:$0xff] %vm56, %v227
  %240 = vst.msk [vmem:[%s238 + $0x8] sm:$0xff] %vm56, %v229
  %241 = vst.msk [vmem:[%s238 + $0x10] sm:$0xff] %vm56, %v231
  %242 = vst.msk [vmem:[%s238 + $0x18] sm:$0xff] %vm56, %v233
  %243 = vrot.lane.b32.xlu0 %v139, 80
  %v244 = vpop.permute.xlu0 %243
  %245 = vrot.lane.b32.xlu0 %v142, 80
  %v246 = vpop.permute.xlu0 %245
  %247 = vrot.lane.b32.xlu0 %v145, 80
  %v248 = vpop.permute.xlu0 %247
  %249 = vrot.lane.b32.xlu0 %v148, 80
  %v250 = vpop.permute.xlu0 %249
  %s255 = scalar_lea.vmem [#allocation2], 192
  %256 = vst.msk [vmem:[%s255] sm:$0xff] %vm56, %v244
  %257 = vst.msk [vmem:[%s255 + $0x8] sm:$0xff] %vm56, %v246
  %258 = vst.msk [vmem:[%s255 + $0x10] sm:$0xff] %vm56, %v248
  %259 = vst.msk [vmem:[%s255 + $0x18] sm:$0xff] %vm56, %v250
  %260 = vrot.lane.b32.xlu0 %v139, 72
  %v261 = vpop.permute.xlu0 %260
  %262 = vrot.lane.b32.xlu0 %v142, 72
  %v263 = vpop.permute.xlu0 %262
  %264 = vrot.lane.b32.xlu0 %v145, 72
  %v265 = vpop.permute.xlu0 %264
  %266 = vrot.lane.b32.xlu0 %v148, 72
  %v267 = vpop.permute.xlu0 %266
  %s272 = scalar_lea.vmem [#allocation2], 224
  %273 = vst.msk [vmem:[%s272] sm:$0xff] %vm56, %v261
  %274 = vst.msk [vmem:[%s272 + $0x8] sm:$0xff] %vm56, %v263
  %275 = vst.msk [vmem:[%s272 + $0x10] sm:$0xff] %vm56, %v265
  %276 = vst.msk [vmem:[%s272 + $0x18] sm:$0xff] %vm56, %v267
  %v277 = vlaneseq
  %v278 = vshrl.u32 %v277, 7
  %v279 = vadd.s32 %v278, 8
  %v280 = vld [vmem:[%s2] sm:$0x1]
  %v281 = vperm.slane %v280, 0
  %vm282 = vcmp.eq.s32.totalorder %v278, %v281
  %vm283 = vcmp.eq.s32.totalorder %v279, %v281
  %v284 = vsel %vm282, 1, 0
  %v285 = vsel %vm283, 1, 0
  %v286 = vcvt.s32.f32 %v284
  %v287 = vcvt.s32.f32 %v285
  %v288 = vlaneseq
  %v289 = vand.u32 %v288, 127
  %v290 = vld [vmem:[%s0] sm:$0xff]
  %v291 = vld [vmem:[%s0 + $0x8] sm:$0xff]
  %v292 = vld [vmem:[%s0 + $0x10] sm:$0xff]
  %v293 = vld [vmem:[%s0 + $0x18] sm:$0xff]
  %294 = vset.pattern.permute.xlu0 0
  %295 = vperm.xlu0 %294, %v290
  %v296 = vpop.permute.xlu0 %295
  %297 = vset.pattern.permute.xlu0 0
  %298 = vperm.xlu0 %297, %v291
  %v299 = vpop.permute.xlu0 %298
  %300 = vset.pattern.permute.xlu0 0
  %301 = vperm.xlu0 %300, %v292
  %v302 = vpop.permute.xlu0 %301
  %303 = vset.pattern.permute.xlu0 0
  %304 = vperm.xlu0 %303, %v293
  %v305 = vpop.permute.xlu0 %304
  %vm306 = vcmp.eq.s32.totalorder %v289, %v296
  %vm307 = vcmp.eq.s32.totalorder %v289, %v299
  %vm308 = vcmp.eq.s32.totalorder %v289, %v302
  %vm309 = vcmp.eq.s32.totalorder %v289, %v305
  %v310 = vsel %vm306, 1, 0
  %v311 = vsel %vm307, 1, 0
  %v312 = vsel %vm308, 1, 0
  %v313 = vsel %vm309, 1, 0
  %v314 = vcvt.s32.f32 %v310
  %v315 = vcvt.s32.f32 %v311
  %v316 = vcvt.s32.f32 %v312
  %v317 = vcvt.s32.f32 %v313
  %v318 = vld [vmem:[%s10] sm:$0xff]
  %v319 = vld [vmem:[%s10 + $0x8] sm:$0xff]
  %v320 = vld [vmem:[%s9] sm:$0xff]
  %v321 = vld [vmem:[%s9 + $0x8] sm:$0xff]
  %323 = vset.pattern.permute.xlu0 0
  %324 = vperm.xlu0 %323, %v320
  %v325 = vpop.permute.xlu0 %324
  %328 = vset.pattern.permute.xlu0 0
  %329 = vperm.xlu0 %328, %v321
  %v330 = vpop.permute.xlu0 %329
  %v332 = vld [vmem:[%s11] sm:$0x1]
  %v334 = vperm.slane %v332, 0
  %v336 = vld [vmem:[%s12] sm:$0x1]
  %v338 = vperm.slane %v336, 0
  %v339 = vld [vmem:[%s13] sm:$0x1]
  %v341 = vperm.slane %v339, 0
  %v342 = vld [vmem:[%s8] sm:$0xff]
  %v343 = vld [vmem:[%s8 + $0x8] sm:$0xff]
  loop: start=0, step=1, limit=3
  $region58: #{tpu_custom_call.1} parent=0 // loop_pre_header
    _
  $region59: #{tpu_custom_call.1} parent=0 // loop_header
    %s345 = sphi 0, %s349
    %p346 = scmp.ge.s32.totalorder %s345, 3
    %v350 = vphi %v342, %v789
    %v351 = vphi %v343, %v791
  $region60: #{tpu_custom_call.1} parent=0 // loop_header_branch
    %348 = sbr.rel (%p346) target = $region64
  $region61: #{tpu_custom_call.1} parent=0 // loop_body
    %v353 = vsel %vm108, %v314, 0
    %v356 = vsel %vm108, %v315, 0
    %v359 = vsel %vm108, %v316, 0
    %v362 = vsel %vm108, %v317, 0
    %364 = vmatpush.msra.mxu0 0.0
    %365 = vmatpush.msra.mxu0 0.0
    %366 = vmatpush.msra.mxu0 0.0
    %367 = vmatpush.msra.mxu0 0.0
    %368 = vmatpush.msra.mxu0 0.0
    %369 = vmatpush.msra.mxu0 0.0
    %370 = vmatpush.msra.mxu0 0.0
    %371 = vmatpush.msra.mxu0 0.0
    %372 = vmatpush.msra.mxu0 0.0
    %373 = vmatpush.msra.mxu0 0.0
    %374 = vmatpush.msra.mxu0 0.0
    %375 = vmatpush.msra.mxu0 0.0
    %376 = vmatpush.msra.mxu0 0.0
    %377 = vmatpush.msra.mxu0 0.0
    %378 = vmatpush.msra.mxu0 %v351
    %379 = vmatpush.msra.mxu0 %v350
    %380 = vmatmul.f32.gmra.mxu0 %v353
    %v381 = vpop.f32.mrf.mxu0
    %v382 = vadd.f32 0.0, %v381
    %383 = vmatmul.f32.gmra.mxu0 %v356
    %v384 = vpop.f32.mrf.mxu0
    %v385 = vadd.f32 0.0, %v384
    %386 = vmatmul.f32.gmra.mxu0 %v359
    %v387 = vpop.f32.mrf.mxu0
    %v388 = vadd.f32 0.0, %v387
    %389 = vmatmul.f32.gmra.mxu0 %v362
    %v390 = vpop.f32.mrf.mxu0
    %v391 = vadd.f32 0.0, %v390
    %392 = vdwg.mxu0
    %v393 = vld [vmem:[#allocation2] sm:$0xff]
    %v394 = vld [vmem:[#allocation2 + $0x8] sm:$0xff]
    %v395 = vld [vmem:[#allocation2 + $0x10] sm:$0xff]
    %v396 = vld [vmem:[#allocation2 + $0x18] sm:$0xff]
    %398 = vset.pattern.permute.xlu0 0
    %399 = vperm.xlu0 %398, %v382
    %v400 = vpop.permute.xlu0 %399
    %403 = vset.pattern.permute.xlu0 0
    %404 = vperm.xlu0 %403, %v385
    %v405 = vpop.permute.xlu0 %404
    %408 = vset.pattern.permute.xlu0 0
    %409 = vperm.xlu0 %408, %v388
    %v410 = vpop.permute.xlu0 %409
    %413 = vset.pattern.permute.xlu0 0
    %414 = vperm.xlu0 %413, %v391
    %v415 = vpop.permute.xlu0 %414
    %v417 = vmul.f32 %v400, %v393
    %v418 = vmul.f32 %v405, %v394
    %v419 = vmul.f32 %v410, %v395
    %v420 = vmul.f32 %v415, %v396
    %v421 = vld [vmem:[%s170] sm:$0xff]
    %v422 = vld [vmem:[%s170 + $0x8] sm:$0xff]
    %v423 = vld [vmem:[%s170 + $0x10] sm:$0xff]
    %v424 = vld [vmem:[%s170 + $0x18] sm:$0xff]
    %425 = vset.pattern.permute.xlu0 1
    %426 = vperm.xlu0 %425, %v382
    %v427 = vpop.permute.xlu0 %426
    %429 = vset.pattern.permute.xlu0 1
    %430 = vperm.xlu0 %429, %v385
    %v431 = vpop.permute.xlu0 %430
    %433 = vset.pattern.permute.xlu0 1
    %434 = vperm.xlu0 %433, %v388
    %v435 = vpop.permute.xlu0 %434
    %437 = vset.pattern.permute.xlu0 1
    %438 = vperm.xlu0 %437, %v391
    %v439 = vpop.permute.xlu0 %438
    %v441 = vmul.f32 %v427, %v421
    %v442 = vmul.f32 %v431, %v422
    %v443 = vmul.f32 %v435, %v423
    %v444 = vmul.f32 %v439, %v424
    %v445 = vadd.f32 %v417, %v441
    %v446 = vadd.f32 %v418, %v442
    %v447 = vadd.f32 %v419, %v443
    %v448 = vadd.f32 %v420, %v444
    %v449 = vld [vmem:[%s187] sm:$0xff]
    %v450 = vld [vmem:[%s187 + $0x8] sm:$0xff]
    %v451 = vld [vmem:[%s187 + $0x10] sm:$0xff]
    %v452 = vld [vmem:[%s187 + $0x18] sm:$0xff]
    %453 = vset.pattern.permute.xlu0 2
    %454 = vperm.xlu0 %453, %v382
    %v455 = vpop.permute.xlu0 %454
    %457 = vset.pattern.permute.xlu0 2
    %458 = vperm.xlu0 %457, %v385
    %v459 = vpop.permute.xlu0 %458
    %461 = vset.pattern.permute.xlu0 2
    %462 = vperm.xlu0 %461, %v388
    %v463 = vpop.permute.xlu0 %462
    %465 = vset.pattern.permute.xlu0 2
    %466 = vperm.xlu0 %465, %v391
    %v467 = vpop.permute.xlu0 %466
    %v469 = vmul.f32 %v455, %v449
    %v470 = vmul.f32 %v459, %v450
    %v471 = vmul.f32 %v463, %v451
    %v472 = vmul.f32 %v467, %v452
    %v473 = vadd.f32 %v445, %v469
    %v474 = vadd.f32 %v446, %v470
    %v475 = vadd.f32 %v447, %v471
    %v476 = vadd.f32 %v448, %v472
    %v477 = vld [vmem:[%s204] sm:$0xff]
    %v478 = vld [vmem:[%s204 + $0x8] sm:$0xff]
    %v479 = vld [vmem:[%s204 + $0x10] sm:$0xff]
    %v480 = vld [vmem:[%s204 + $0x18] sm:$0xff]
    %481 = vset.pattern.permute.xlu0 3
    %482 = vperm.xlu0 %481, %v382
    %v483 = vpop.permute.xlu0 %482
    %485 = vset.pattern.permute.xlu0 3
    %486 = vperm.xlu0 %485, %v385
    %v487 = vpop.permute.xlu0 %486
    %489 = vset.pattern.permute.xlu0 3
    %490 = vperm.xlu0 %489, %v388
    %v491 = vpop.permute.xlu0 %490
    %493 = vset.pattern.permute.xlu0 3
    %494 = vperm.xlu0 %493, %v391
    %v495 = vpop.permute.xlu0 %494
    %v497 = vmul.f32 %v483, %v477
    %v498 = vmul.f32 %v487, %v478
    %v499 = vmul.f32 %v491, %v479
    %v500 = vmul.f32 %v495, %v480
    %v501 = vadd.f32 %v473, %v497
    %v502 = vadd.f32 %v474, %v498
    %v503 = vadd.f32 %v475, %v499
    %v504 = vadd.f32 %v476, %v500
    %v505 = vld [vmem:[%s221] sm:$0xff]
    %v506 = vld [vmem:[%s221 + $0x8] sm:$0xff]
    %v507 = vld [vmem:[%s221 + $0x10] sm:$0xff]
    %v508 = vld [vmem:[%s221 + $0x18] sm:$0xff]
    %509 = vset.pattern.permute.xlu0 4
    %510 = vperm.xlu0 %509, %v382
    %v511 = vpop.permute.xlu0 %510
    %513 = vset.pattern.permute.xlu0 4
    %514 = vperm.xlu0 %513, %v385
    %v515 = vpop.permute.xlu0 %514
    %517 = vset.pattern.permute.xlu0 4
    %518 = vperm.xlu0 %517, %v388
    %v519 = vpop.permute.xlu0 %518
    %521 = vset.pattern.permute.xlu0 4
    %522 = vperm.xlu0 %521, %v391
    %v523 = vpop.permute.xlu0 %522
    %v525 = vmul.f32 %v511, %v505
    %v526 = vmul.f32 %v515, %v506
    %v527 = vmul.f32 %v519, %v507
    %v528 = vmul.f32 %v523, %v508
    %v529 = vadd.f32 %v501, %v525
    %v530 = vadd.f32 %v502, %v526
    %v531 = vadd.f32 %v503, %v527
    %v532 = vadd.f32 %v504, %v528
    %v533 = vld [vmem:[%s238] sm:$0xff]
    %v534 = vld [vmem:[%s238 + $0x8] sm:$0xff]
    %v535 = vld [vmem:[%s238 + $0x10] sm:$0xff]
    %v536 = vld [vmem:[%s238 + $0x18] sm:$0xff]
    %537 = vset.pattern.permute.xlu0 5
    %538 = vperm.xlu0 %537, %v382
    %v539 = vpop.permute.xlu0 %538
    %541 = vset.pattern.permute.xlu0 5
    %542 = vperm.xlu0 %541, %v385
    %v543 = vpop.permute.xlu0 %542
    %545 = vset.pattern.permute.xlu0 5
    %546 = vperm.xlu0 %545, %v388
    %v547 = vpop.permute.xlu0 %546
    %549 = vset.pattern.permute.xlu0 5
    %550 = vperm.xlu0 %549, %v391
    %v551 = vpop.permute.xlu0 %550
    %v553 = vmul.f32 %v539, %v533
    %v554 = vmul.f32 %v543, %v534
    %v555 = vmul.f32 %v547, %v535
    %v556 = vmul.f32 %v551, %v536
    %v557 = vadd.f32 %v529, %v553
    %v558 = vadd.f32 %v530, %v554
    %v559 = vadd.f32 %v531, %v555
    %v560 = vadd.f32 %v532, %v556
    %v561 = vld [vmem:[%s255] sm:$0xff]
    %v562 = vld [vmem:[%s255 + $0x8] sm:$0xff]
    %v563 = vld [vmem:[%s255 + $0x10] sm:$0xff]
    %v564 = vld [vmem:[%s255 + $0x18] sm:$0xff]
    %565 = vset.pattern.permute.xlu0 6
    %566 = vperm.xlu0 %565, %v382
    %v567 = vpop.permute.xlu0 %566
    %569 = vset.pattern.permute.xlu0 6
    %570 = vperm.xlu0 %569, %v385
    %v571 = vpop.permute.xlu0 %570
    %573 = vset.pattern.permute.xlu0 6
    %574 = vperm.xlu0 %573, %v388
    %v575 = vpop.permute.xlu0 %574
    %577 = vset.pattern.permute.xlu0 6
    %578 = vperm.xlu0 %577, %v391
    %v579 = vpop.permute.xlu0 %578
    %v581 = vmul.f32 %v567, %v561
    %v582 = vmul.f32 %v571, %v562
    %v583 = vmul.f32 %v575, %v563
    %v584 = vmul.f32 %v579, %v564
    %v585 = vadd.f32 %v557, %v581
    %v586 = vadd.f32 %v558, %v582
    %v587 = vadd.f32 %v559, %v583
    %v588 = vadd.f32 %v560, %v584
    %v589 = vld [vmem:[%s272] sm:$0xff]
    %v590 = vld [vmem:[%s272 + $0x8] sm:$0xff]
    %v591 = vld [vmem:[%s272 + $0x10] sm:$0xff]
    %v592 = vld [vmem:[%s272 + $0x18] sm:$0xff]
    %593 = vset.pattern.permute.xlu0 7
    %594 = vperm.xlu0 %593, %v382
    %v595 = vpop.permute.xlu0 %594
    %597 = vset.pattern.permute.xlu0 7
    %598 = vperm.xlu0 %597, %v385
    %v599 = vpop.permute.xlu0 %598
    %601 = vset.pattern.permute.xlu0 7
    %602 = vperm.xlu0 %601, %v388
    %v603 = vpop.permute.xlu0 %602
    %605 = vset.pattern.permute.xlu0 7
    %606 = vperm.xlu0 %605, %v391
    %v607 = vpop.permute.xlu0 %606
    %v609 = vmul.f32 %v595, %v589
    %v610 = vmul.f32 %v599, %v590
    %v611 = vmul.f32 %v603, %v591
    %v612 = vmul.f32 %v607, %v592
    %v613 = vadd.f32 %v585, %v609
    %v614 = vadd.f32 %v586, %v610
    %v615 = vadd.f32 %v587, %v611
    %v616 = vadd.f32 %v588, %v612
    %vm617 = vcmask 261120
    %v619 = vsel %vm617, %v286, 0
    %v622 = vsel %vm617, %v287, 0
    %624 = vmatpush.msra.mxu0 0.0
    %625 = vmatpush.msra.mxu0 0.0
    %626 = vmatpush.msra.mxu0 0.0
    %627 = vmatpush.msra.mxu0 0.0
    %628 = vmatpush.msra.mxu0 0.0
    %629 = vmatpush.msra.mxu0 0.0
    %630 = vmatpush.msra.mxu0 0.0
    %631 = vmatpush.msra.mxu0 0.0
    %632 = vmatpush.msra.mxu0 0.0
    %633 = vmatpush.msra.mxu0 0.0
    %634 = vmatpush.msra.mxu0 0.0
    %635 = vmatpush.msra.mxu0 0.0
    %636 = vmatpush.msra.mxu0 %v616
    %637 = vmatpush.msra.mxu0 %v615
    %638 = vmatpush.msra.mxu0 %v614
    %639 = vmatpush.msra.mxu0 %v613
    %640 = vmatmul.f32.gmra.mxu0 %v619
    %v641 = vpop.f32.mrf.mxu0
    %v642 = vadd.f32 0.0, %v641
    %643 = vmatmul.f32.gmra.mxu0 %v622
    %v644 = vpop.f32.mrf.mxu0
    %v645 = vadd.f32 0.0, %v644
    %646 = vdwg.mxu0
    %v647 = vmul.f32 %v642, %v325
    %v648 = vmul.f32 %v645, %v330
    %651 = vrot.lane.b32.xlu0 %v350, 8
    %v652 = vpop.permute.xlu0 %651
    %653 = vrot.lane.b32.xlu0 %v351, 8
    %v654 = vpop.permute.xlu0 %653
    %v657 = vsel %vm56, %v647, %v652
    %v658 = vsel %vm56, %v648, %v654
    %v660 = vsel %vm108, %v657, 0
    %v663 = vsel %vm108, %v658, 0
    %665 = vmatpush.msra.mxu0 0.0
    %666 = vmatpush.msra.mxu0 0.0
    %667 = vmatpush.msra.mxu0 0.0
    %668 = vmatpush.msra.mxu0 0.0
    %669 = vmatpush.msra.mxu0 0.0
    %670 = vmatpush.msra.mxu0 0.0
    %671 = vmatpush.msra.mxu0 0.0
    %672 = vmatpush.msra.mxu0 0.0
    %673 = vmatpush.msra.mxu0 0.0
    %674 = vmatpush.msra.mxu0 0.0
    %675 = vmatpush.msra.mxu0 0.0
    %676 = vmatpush.msra.mxu0 0.0
    %677 = vmatpush.msra.mxu0 0.0
    %678 = vmatpush.msra.mxu0 0.0
    %679 = vmatpush.msra.mxu0 %v319
    %680 = vmatpush.msra.mxu0 %v318
    %681 = vmatmul.f32.gmra.mxu0 %v660
    %v682 = vpop.f32.mrf.mxu0
    %v683 = vadd.f32 0.0, %v682
    %684 = vmatmul.f32.gmra.mxu0 %v663
    %v685 = vpop.f32.mrf.mxu0
    %v686 = vadd.f32 0.0, %v685
    %687 = vdwg.mxu0
    %690 = vrot.lane.b32.xlu0 %v683, 104
    %v691 = vpop.permute.xlu0 %690
    %692 = vrot.lane.b32.xlu0 %v686, 104
    %v693 = vpop.permute.xlu0 %692
    %v696 = vadd.f32 %v683, %v691
    %v697 = vadd.f32 %v686, %v693
    %v698 = vadd.f32 %v696, %v334
    %v699 = vadd.f32 %v697, %v334
    %v700 = vxor.u32 %v698, 2147483648
    %v701 = vxor.u32 %v699, 2147483648
    %v702 = vmul.f32 %v700, 1.442695
    %v703 = vpow.pop %v702
    %v704 = vmul.f32 %v701, 1.442695
    %v705 = vpow.pop %v704
    %v706 = vadd.f32 %v703, 1.0
    %v707 = vadd.f32 %v705, 1.0
    %v708 = vrcp.pop %v706
    %v709 = vmul.f32 %v706, %v708
    %v710 = vsub.f32 1.0, %v709
    %v711 = vmul.f32 %v708, %v710
    %v712 = vadd.f32 %v708, %v711
    %vm713 = vweird.f32 %v706
    %vm714 = vweird.f32 %v708
    %vm715 = vmor %vm713, %vm714
    %v716 = vsel %vm715, %v708, %v712
    %v717 = vand.u32 2147483647, %v706
    %vm718 = vcmp.eq.f32.partialorder %v717, 8.507059e+37
    %v719 = vand.u32 %v706, 2147483648
    %v720 = vor.u32 1.1754944e-38, %v719
    %v721 = vsel %vm718, %v720, %v716
    %v722 = vmul.f32 1.0, %v721
    %v723 = vrcp.pop %v707
    %v724 = vmul.f32 %v707, %v723
    %v725 = vsub.f32 1.0, %v724
    %v726 = vmul.f32 %v723, %v725
    %v727 = vadd.f32 %v723, %v726
    %vm728 = vweird.f32 %v707
    %vm729 = vweird.f32 %v723
    %vm730 = vmor %vm728, %vm729
    %v731 = vsel %vm730, %v723, %v727
    %v732 = vand.u32 2147483647, %v707
    %vm733 = vcmp.eq.f32.partialorder %v732, 8.507059e+37
    %v734 = vand.u32 %v707, 2147483648
    %v735 = vor.u32 1.1754944e-38, %v734
    %v736 = vsel %vm733, %v735, %v731
    %v737 = vmul.f32 1.0, %v736
    %738 = vrot.lane.b32.xlu0 %v338, 16
    %v739 = vpop.permute.xlu0 %738
    %v741 = vadd.f32 %v683, %v739
    %v742 = vadd.f32 %v686, %v739
    %743 = vrot.lane.b32.xlu0 %v341, 40
    %v744 = vpop.permute.xlu0 %743
    %v746 = vadd.f32 %v683, %v744
    %v747 = vadd.f32 %v686, %v744
    %750 = vrot.lane.b32.xlu0 %v746, 88
    %v751 = vpop.permute.xlu0 %750
    %752 = vrot.lane.b32.xlu0 %v747, 88
    %v753 = vpop.permute.xlu0 %752
    %v756 = vmul.f32 %v722, %v751
    %v757 = vmul.f32 %v737, %v753
    %760 = vrot.lane.b32.xlu0 %v756, 16
    %v761 = vpop.permute.xlu0 %760
    %762 = vrot.lane.b32.xlu0 %v757, 16
    %v763 = vpop.permute.xlu0 %762
    %v766 = vadd.f32 %v741, %v761
    %v767 = vadd.f32 %v742, %v763
    %v768 = vtanh.pop %v766
    %v769 = vtanh.pop %v767
    %v770 = vsub.f32 1.0, %v722
    %v771 = vsub.f32 1.0, %v737
    %774 = vrot.lane.b32.xlu0 %v768, 120
    %v775 = vpop.permute.xlu0 %774
    %776 = vrot.lane.b32.xlu0 %v769, 120
    %v777 = vpop.permute.xlu0 %776
    %v780 = vmul.f32 %v770, %v775
    %v781 = vmul.f32 %v771, %v777
    %v782 = vmul.f32 %v722, %v652
    %v783 = vmul.f32 %v737, %v654
    %v784 = vadd.f32 %v780, %v782
    %v785 = vadd.f32 %v781, %v783
    %788 = vrot.lane.b32.xlu0 %v784, 120
    %v789 = vpop.permute.xlu0 %788
    %790 = vrot.lane.b32.xlu0 %v785, 120
    %v791 = vpop.permute.xlu0 %790
  $region62: #{tpu_custom_call.1} parent=0 // loop_footer
    %s349 = sadd.s32 1, %s345
  $region63: #{tpu_custom_call.1} parent=0 // loop_footer_branch
    %344 = sbr.rel target = $region59
  $region64: #{tpu_custom_call.1} parent=0 // loop_exit
    _
  %794 = vst.msk [vmem:[%s14] sm:$0xff] %vm56, %v350
  %795 = vst.msk [vmem:[%s14 + $0x8] sm:$0xff] %vm56, %v351
  // Predicated region
  $region65: #{tpu_custom_call.1} parent=0 // pred_check
    _
  $region66: #{tpu_custom_call.1} parent=0 // pred_check_branch
    %797 = sbr.rel (0) target = $region68
  $region67: #{tpu_custom_call.1} parent=0 // pred_region
    _
  $region68: #{tpu_custom_call.1} parent=0 // pred_fallthru
    _
  // Predicated region
  $region69: #{tpu_custom_call.1} parent=0 // pred_check
    _
  $region70: #{tpu_custom_call.1} parent=0 // pred_check_branch
    %799 = sbr.rel (0) target = $region72
  $region71: #{tpu_custom_call.1} parent=0 // pred_region
    _
  $region72: #{tpu_custom_call.1} parent=0 // pred_fallthru
    _

</llo_original>
